<compile_context>
chip_gen: v5e
topology: v5e:2x2
jax: 0.10.0
libtpu: 0.0.40
codegen_flags: <defaults>
</compile_context>

<pallas_src>
import jax
import jax.numpy as jnp
from jax.experimental import pallas as pl
from jax.experimental.pallas import tpu as pltpu


def _round_up(v, m):
    return ((v + m - 1) // m) * m


def _split_kernel(x_ref, box_ref, score_ref):
    # x_ref:     (1, TILE_N, C)  original layout; channels on the lane axis.
    # box_ref:   (1, TILE_N, 4)
    # score_ref: (1, TILE_N, nc)
    box_ref[...] = x_ref[:, :, 0:4]
    conf = x_ref[:, :, 4:5]                      # (1, TILE_N, 1) objectness
    score_ref[...] = (x_ref[:, :, 5:] * conf).astype(score_ref.dtype)


def _choose_tile_n(B, N, C, nc, itemsize, vmem_budget_bytes=24 * 1024 * 1024):
    """Pick a sublane tile for N: as large as possible under the VMEM budget,
    multiple of 8 (sublane rule), with >= 2 N-steps when batch alone cannot
    feed both v7x TensorCores."""
    n_round = _round_up(N, 8)
    # Double-buffered bytes per row of N: input (C) + box (4) + score (nc).
    bytes_per_row = (C + 4 + nc) * itemsize * 2
    cap = max(8, (vmem_budget_bytes // bytes_per_row) // 8 * 8)
    tile_n = min(n_round, cap, 8192)
    if B == 1 and N > 256 and tile_n >= n_round:
        # Split N into two roughly equal steps so both v7x cores get work.
        tile_n = _round_up(-(-N // 2), 8)
    return tile_n


def split_box_score(x):
    """box = x[:,:,:4]; score = x[:,:,5:] * x[:,:,4:5] — one fused Pallas pass."""
    B, N, C = x.shape
    nc = C - 5
    itemsize = jnp.dtype(x.dtype).itemsize

    tile_n = _choose_tile_n(B, N, C, nc, itemsize)
    grid = (B, pl.cdiv(N, tile_n))

    cost = pl.CostEstimate(
        flops=B * N * nc,
        transcendentals=0,
        bytes_accessed=B * N * (C + 4 + nc) * itemsize,
    )

    grid_spec = pl.GridSpec(
        grid=grid,
        in_specs=[pl.BlockSpec((1, tile_n, C), lambda b, n: (b, n, 0))],
        out_specs=[
            pl.BlockSpec((1, tile_n, 4), lambda b, n: (b, n, 0)),
            pl.BlockSpec((1, tile_n, nc), lambda b, n: (b, n, 0)),
        ],
    )

    box, score = pl.pallas_call(
        _split_kernel,
        out_shape=(
            jax.ShapeDtypeStruct((B, N, 4), x.dtype),
            jax.ShapeDtypeStruct((B, N, nc), x.dtype),
        ),
        grid_spec=grid_spec,
        compiler_params=pltpu.CompilerParams(
            dimension_semantics=("parallel", "parallel"),
            vmem_limit_bytes=32 * 1024 * 1024,
        ),
        cost_estimate=cost,
    )(x)
    return box, score


class ONNX_TRT8_Pallas:
    """JAX/Pallas equivalent of ONNX_TRT8 (module has no learned parameters)."""

    def __init__(self, max_obj=100, iou_thres=0.45, score_thres=0.25):
        self.background_class = -1
        self.box_coding = 1
        self.iou_threshold = iou_thres
        self.max_obj = max_obj
        self.plugin_version = "1"
        self.score_activation = 0
        self.score_threshold = score_thres

    def __call__(self, x):
        B, N, C = x.shape
        num_classes = C - 5

        # Hot path: one fused Pallas pass producing both box and score.
        box, score = split_box_score(x)

        # TODO(synk): TRT::EfficientNMS_TRT is a TensorRT plugin with no
        # reference semantics; the PyTorch placeholder returns random tensors,
        # so we emit deterministic placeholders with identical shapes/dtypes.
        k0, k1, k2, k3 = jax.random.split(jax.random.PRNGKey(42), 4)
        num_det = jax.random.randint(
            k0, (B, 1), 0, self.max_obj, dtype=jnp.int32)
        det_boxes = jax.random.normal(
            k1, (B, self.max_obj, 4), dtype=jnp.float32)
        det_scores = jax.random.normal(
            k2, (B, self.max_obj), dtype=jnp.float32)
        det_classes = jax.random.randint(
            k3, (B, self.max_obj), 0, num_classes, dtype=jnp.int32)

        # box/score are the tensors actually fed to the NMS plugin; keep them
        # around so the Pallas compute is not dead-code-eliminated.
        self._last_box = box
        self._last_score = score
        return num_det, det_boxes, det_scores, det_classes


if __name__ == "__main__":
    # Small YOLO-style head output: batch=2, 128 candidate boxes,
    # channels = 4 (box) + 1 (objectness) + 3 (classes) = 8.
    B, N, NC = 2, 128, 3
    C = 5 + NC
    x = jax.random.normal(jax.random.PRNGKey(0), (B, N, C), dtype=jnp.float32)

    model = ONNX_TRT8_Pallas(max_obj=100, iou_thres=0.45, score_thres=0.25)
    num_det, det_boxes, det_scores, det_classes = model(x)
    jax.block_until_ready((num_det, det_boxes, det_scores, det_classes))
    jax.block_until_ready((model._last_box, model._last_score))

    # Sanity-check the Pallas hot path against a pure-JAX reference.
    ref_box = x[:, :, :4]
    ref_score = x[:, :, 5:] * x[:, :, 4:5]
    assert jnp.allclose(model._last_box, ref_box, atol=1e-6)
    assert jnp.allclose(model._last_score, ref_score, atol=1e-6)
    assert num_det.shape == (B, 1) and num_det.dtype == jnp.int32
    assert det_boxes.shape == (B, 100, 4)
    assert det_scores.shape == (B, 100)
    assert det_classes.shape == (B, 100) and det_classes.dtype == jnp.int32

    print("KERNEL_OK")
</pallas_src>

<mosaic_0001>
module attributes {stable_mosaic.version = 11 : i64} {
  func.func @_split_kernel(%arg0: i32, %arg1: i32, %arg2: memref<1x128x8xf32, #tpu.memory_space<vmem>>, %arg3: memref<1x128x4xf32, #tpu.memory_space<vmem>>, %arg4: memref<1x128x3xf32, #tpu.memory_space<vmem>>) attributes {dimension_semantics = [#tpu.dimension_semantics<parallel>, #tpu.dimension_semantics<parallel>], iteration_bounds = array<i64: 2, 1>, scalar_prefetch = 0 : i64, scratch_operands = 0 : i64, tpu.core_type = #tpu.core_type<tc>, window_params = [{transform_indices = @transform_0, window_bounds = array<i64: 1, 128, 8>}, {transform_indices = @transform_1, window_bounds = array<i64: 1, 128, 4>}, {transform_indices = @transform_2, window_bounds = array<i64: 1, 128, 3>}]} {
    %c0 = arith.constant 0 : index
    %c0_0 = arith.constant 0 : index
    %c0_1 = arith.constant 0 : index
    %0 = vector.load %arg2[%c0, %c0_0, %c0_1] : memref<1x128x8xf32, #tpu.memory_space<vmem>>, vector<1x128x4xf32>
    %c0_2 = arith.constant 0 : index
    %c0_3 = arith.constant 0 : index
    %c0_4 = arith.constant 0 : index
    %1 = vector.load %arg3[%c0_2, %c0_3, %c0_4] : memref<1x128x4xf32, #tpu.memory_space<vmem>>, vector<1x128x4xf32>
    tpu.vector_store %arg3[%c0_2, %c0_3, %c0_4], %0 {strides = array<i32>} : memref<1x128x4xf32, #tpu.memory_space<vmem>>, vector<1x128x4xf32>,
    %c0_5 = arith.constant 0 : index
    %c0_6 = arith.constant 0 : index
    %c4 = arith.constant 4 : index
    %2 = vector.load %arg2[%c0_5, %c0_6, %c4] : memref<1x128x8xf32, #tpu.memory_space<vmem>>, vector<1x128x1xf32>
    %c0_7 = arith.constant 0 : index
    %c0_8 = arith.constant 0 : index
    %c5 = arith.constant 5 : index
    %3 = vector.load %arg2[%c0_7, %c0_8, %c5] : memref<1x128x8xf32, #tpu.memory_space<vmem>>, vector<1x128x3xf32>
    %4 = vector.broadcast %2 : vector<1x128x1xf32> to vector<1x128x3xf32>
    %5 = arith.mulf %3, %4 : vector<1x128x3xf32>
    %c0_9 = arith.constant 0 : index
    %c0_10 = arith.constant 0 : index
    %c0_11 = arith.constant 0 : index
    %6 = vector.load %arg4[%c0_9, %c0_10, %c0_11] : memref<1x128x3xf32, #tpu.memory_space<vmem>>, vector<1x128x3xf32>
    tpu.vector_store %arg4[%c0_9, %c0_10, %c0_11], %5 {strides = array<i32>} : memref<1x128x3xf32, #tpu.memory_space<vmem>>, vector<1x128x3xf32>,
    return
  }
  func.func @transform_0(%arg0: i32, %arg1: i32) -> (i32, i32, i32) {
    %c0_i32 = arith.constant 0 : i32
    %c0_i32_0 = arith.constant 0 : i32
    return %arg0, %arg1, %c0_i32 : i32, i32, i32
  }
  func.func @transform_1(%arg0: i32, %arg1: i32) -> (i32, i32, i32) {
    %c0_i32 = arith.constant 0 : i32
    %c0_i32_0 = arith.constant 0 : i32
    return %arg0, %arg1, %c0_i32 : i32, i32, i32
  }
  func.func @transform_2(%arg0: i32, %arg1: i32) -> (i32, i32, i32) {
    %c0_i32 = arith.constant 0 : i32
    %c0_i32_0 = arith.constant 0 : i32
    return %arg0, %arg1, %c0_i32 : i32, i32, i32
  }
}

</mosaic_0001>

<llo_original>
// kernel: tpu_custom_call.1
$region0: #{tpu_custom_call.1}
  #allocation0 [shape = 'u32[]', space=smem, size = 0x4, offset = 0x4, fixed_abs, tag = 'smem constant byte address 0x4 - core index']
  #allocation1 [shape = 'u32[72,128]{1,0:T(1,128)}', space=vmem, size = 0x9000, scoped, tag = 'internal scratch']
  %s0 = inlined_call_operand.vmem [shape: f32[2,128,8], index: 0, kind: input, shape index: {}]
  %s1 = inlined_call_operand.vmem [shape: f32[2,128,4], index: 1, kind: output, shape index: {0}]
  %s2 = inlined_call_operand.vmem [shape: f32[2,128,3], index: 2, kind: output, shape index: {1}]
  %3 = xla_tuple %s1, %s2
  %s4 = sld [smem:[#allocation0]]
  $region45: #{tpu_custom_call.1} parent=0
    _
  %s6 = ssub.s32 1, %s4
  %s7 = scalar_select 0, %s6, %s4
  loop: start=0, step=1, limit=4
  $region2: #{tpu_custom_call.1} parent=0 // loop_pre_header
    _
  $region3: #{tpu_custom_call.1} parent=0 // loop_header
    %s9 = sphi 0, %s13
    %p10 = scmp.ge.s32.totalorder %s9, 4
    %s16 = sphi 0, %s28
    %s17 = sphi 0, %s24
    %s18 = sphi 0, %s16
    %s19 = sphi 0, %s17
    %s20 = sphi 0, %s18
    %s21 = sphi 0, %s19
    %s33 = sphi 0, %s35
    %s36 = sphi 0, %s33
    %s37 = sphi 0, %s36
    %s53 = sphi 0, %s37
    %s61 = sphi 0, %s63
    %s64 = sphi 0, %s61
    %s65 = sphi 0, %s64
    %s81 = sphi 0, %s65
    %s89 = sphi 0, %s91
    %s92 = sphi 0, %s89
    %s93 = sphi 0, %s92
    %s109 = sphi 0, %s93
  $region4: #{tpu_custom_call.1} parent=0 // loop_header_branch
    %12 = sbr.rel (%p10) target = $region8
  $region5: #{tpu_custom_call.1} parent=0 // loop_body
    %s14 = ssub.s32 %s9, 1
    %s15 = ssub.s32 %s9, 2
    %s22 = sadd.s32 1, %s17
    %p23 = scmp.ge.s32.totalorder %s22, 1
    %s24 = scalar_select %p23, 0, %s22
    %s25 = sadd.s32 1, %s16
    %s26 = scalar_select %p23, %s25, %s16
    %p27 = scmp.ge.s32.totalorder %s26, 2
    %s28 = scalar_select %p27, 0, %s26
    %s29 = ssub.s32 %s16, %s28
    %s30 = ssub.s32 %s17, %s24
    %s31 = sor.u32 %s29, %s30
    %p32 = scmp.eq.s32.totalorder %s31, 0
    %s34 = sadd.s32 %s33, 1
    %s35 = scalar_select %p32, %s33, %s34
    %p38 = pneg %p32
    %p39 = scmp.eq.s32.totalorder %s9, 1
    %p40 = por %p38, %p39
    %p41 = scmp.ne.s32.totalorder %s33, %s36
    %p42 = scmp.eq.s32.totalorder %s9, 0
    %p43 = por %p41, %p42
    %p44 = scmp.ne.s32.totalorder %s33, %s36
    %p45 = scmp.eq.s32.totalorder %s14, 1
    %p46 = por %p44, %p45
    %p47 = scmp.ne.s32.totalorder %s36, %s37
    %p48 = scmp.eq.s32.totalorder %s14, 0
    %p49 = por %p47, %p48
    %p50 = scmp.ne.s32.totalorder %s36, %s37
    %p51 = scmp.eq.s32.totalorder %s15, 1
    %p52 = por %p50, %p51
    %p54 = scmp.ne.s32.totalorder %s37, %s53
    %p55 = scmp.eq.s32.totalorder %s15, 0
    %p56 = por %p54, %p55
    %s57 = ssub.s32 %s16, %s28
    %s58 = ssub.s32 %s17, %s24
    %s59 = sor.u32 %s57, %s58
    %p60 = scmp.eq.s32.totalorder %s59, 0
    %s62 = sadd.s32 %s61, 1
    %s63 = scalar_select %p60, %s61, %s62
    %p66 = pneg %p60
    %p67 = scmp.eq.s32.totalorder %s9, 1
    %p68 = por %p66, %p67
    %p69 = scmp.ne.s32.totalorder %s61, %s64
    %p70 = scmp.eq.s32.totalorder %s9, 0
    %p71 = por %p69, %p70
    %p72 = scmp.ne.s32.totalorder %s61, %s64
    %p73 = scmp.eq.s32.totalorder %s14, 1
    %p74 = por %p72, %p73
    %p75 = scmp.ne.s32.totalorder %s64, %s65
    %p76 = scmp.eq.s32.totalorder %s14, 0
    %p77 = por %p75, %p76
    %p78 = scmp.ne.s32.totalorder %s64, %s65
    %p79 = scmp.eq.s32.totalorder %s15, 1
    %p80 = por %p78, %p79
    %p82 = scmp.ne.s32.totalorder %s65, %s81
    %p83 = scmp.eq.s32.totalorder %s15, 0
    %p84 = por %p82, %p83
    %s85 = ssub.s32 %s16, %s28
    %s86 = ssub.s32 %s17, %s24
    %s87 = sor.u32 %s85, %s86
    %p88 = scmp.eq.s32.totalorder %s87, 0
    %s90 = sadd.s32 %s89, 1
    %s91 = scalar_select %p88, %s89, %s90
    %p94 = pneg %p88
    %p95 = scmp.eq.s32.totalorder %s9, 1
    %p96 = por %p94, %p95
    %p97 = scmp.ne.s32.totalorder %s89, %s92
    %p98 = scmp.eq.s32.totalorder %s9, 0
    %p99 = por %p97, %p98
    %p100 = scmp.ne.s32.totalorder %s89, %s92
    %p101 = scmp.eq.s32.totalorder %s14, 1
    %p102 = por %p100, %p101
    %p103 = scmp.ne.s32.totalorder %s92, %s93
    %p104 = scmp.eq.s32.totalorder %s14, 0
    %p105 = por %p103, %p104
    %p106 = scmp.ne.s32.totalorder %s92, %s93
    %p107 = scmp.eq.s32.totalorder %s15, 1
    %p108 = por %p106, %p107
    %p110 = scmp.ne.s32.totalorder %s93, %s109
    %p111 = scmp.eq.s32.totalorder %s15, 0
    %p112 = por %p110, %p111
    %p113 = scmp.le.s32.totalorder 1, %s9
    %p114 = scmp.lt.s32.totalorder %s9, 3
    %p115 = pnand %p113, %p114
    %p116 = pneg %p115
    // Predicated region
    $region9: #{tpu_custom_call.1} parent=5 // pred_check
      _
    $region10: #{tpu_custom_call.1} parent=5 // pred_check_branch
      %118 = sbr.rel (%p115) target = $region12
    $region11: #{tpu_custom_call.1} parent=5 // pred_region
      %s119 = ssub.s32 %s9, 1
    $region12: #{tpu_custom_call.1} parent=5 // pred_fallthru
      _
    %p120 = scmp.lt.s32.totalorder %s9, 2
    // Predicated region
    $region13: #{tpu_custom_call.1} parent=5 // pred_check
      %p121 = pneg %p120
    $region14: #{tpu_custom_call.1} parent=5 // pred_check_branch
      %123 = sbr.rel (%p121) target = $region16
    $region15: #{tpu_custom_call.1} parent=5 // pred_region
      // Predicated region
      $region17: #{tpu_custom_call.1} parent=15 // pred_check
        %p124 = pneg %p43
      $region18: #{tpu_custom_call.1} parent=15 // pred_check_branch
        %126 = sbr.rel (%p124) target = $region20
      $region19: #{tpu_custom_call.1} parent=15 // pred_region
        %s127 = smul.u32 16, %s17
        %p128 = scmp.lt.s32.totalorder %s16, 1
        %s129 = scalar_select %p128, %s16, 1
        %p130 = scmp.lt.s32.totalorder %s127, 15
        %s131 = scalar_select %p130, %s127, 15
        %s132 = smul.addr %s129, 16
        %s133 = sadd.s32 %s131, %s132
        %s134 = smul.addr %s133, 8
        %s135 = scalar_lea.vmem %s0, %s134
        %s136 = smul.u32 16, %s17
      $region20: #{tpu_custom_call.1} parent=15 // pred_fallthru
        _
    $region16: #{tpu_custom_call.1} parent=5 // pred_fallthru
      _
    %p137 = scmp.le.s32.totalorder 1, %s9
    %p138 = scmp.lt.s32.totalorder %s9, 3
    %p139 = pnand %p137, %p138
    %p140 = pneg %p139
    // Predicated region
    $region21: #{tpu_custom_call.1} parent=5 // pred_check
      _
    $region22: #{tpu_custom_call.1} parent=5 // pred_check_branch
      %142 = sbr.rel (%p139) target = $region24
    $region23: #{tpu_custom_call.1} parent=5 // pred_region
      %s143 = ssub.s32 %s9, 1
      %s144 = smul.u32 16, %s19
      %p145 = scmp.lt.s32.totalorder %s18, 1
      %s146 = scalar_select %p145, %s18, 1
      %p147 = scmp.lt.s32.totalorder %s144, 15
      %s148 = scalar_select %p147, %s144, 15
      %s149 = smul.addr %s146, 16
      %s150 = sadd.s32 %s148, %s149
      %s151 = smul.addr %s150, 8
      %s152 = scalar_lea.vmem %s0, %s151
      %p153 = pneg %p49
      %p154 = pneg %p46
      %p155 = pneg %p77
      %p156 = pneg %p74
      %s157 = smul.u32 16, %s19
      %p158 = scmp.lt.s32.totalorder %s18, 1
      %s159 = scalar_select %p158, %s18, 1
      %p160 = scmp.lt.s32.totalorder %s157, 15
      %s161 = scalar_select %p160, %s157, 15
      %s162 = smul.addr %s159, 16
      %s163 = sadd.s32 %s161, %s162
      %s164 = smul.addr %s163, 8
      %s165 = scalar_lea.vmem %s1, %s164
      %p166 = pneg %p105
      %p167 = pneg %p102
      %s168 = smul.u32 16, %s19
      %p169 = scmp.lt.s32.totalorder %s18, 1
      %s170 = scalar_select %p169, %s18, 1
      %p171 = scmp.lt.s32.totalorder %s168, 15
      %s172 = scalar_select %p171, %s168, 15
      %s173 = smul.addr %s170, 16
      %s174 = sadd.s32 %s172, %s173
      %s175 = smul.addr %s174, 8
      %s176 = scalar_lea.vmem %s2, %s175
      %s177 = smul.u32 16, %s19
      %p178 = scmp.lt.s32.totalorder %s18, 1
      %s179 = scalar_select %p178, %s18, 1
      %p180 = scmp.lt.s32.totalorder %s177, 15
      %s181 = scalar_select %p180, %s177, 15
      %s182 = smul.addr %s179, 16
      %s183 = sadd.s32 %s181, %s182
      %s184 = smul.addr %s183, 8
      %s185 = scalar_lea.vmem %s0, %s184
      %s186 = smul.u32 16, %s19
      %s187 = smul.u32 16, %s19
      %p188 = scmp.lt.s32.totalorder %s18, 1
      %s189 = scalar_select %p188, %s18, 1
      %p190 = scmp.lt.s32.totalorder %s187, 15
      %s191 = scalar_select %p190, %s187, 15
      %s192 = smul.addr %s189, 16
      %s193 = sadd.s32 %s191, %s192
      %s194 = smul.addr %s193, 8
      %s195 = scalar_lea.vmem %s1, %s194
      %s196 = smul.u32 16, %s19
      %s197 = smul.u32 16, %s19
      %p198 = scmp.lt.s32.totalorder %s18, 1
      %s199 = scalar_select %p198, %s18, 1
      %p200 = scmp.lt.s32.totalorder %s197, 15
      %s201 = scalar_select %p200, %s197, 15
      %s202 = smul.addr %s199, 16
      %s203 = sadd.s32 %s201, %s202
      %s204 = smul.addr %s203, 8
      %s205 = scalar_lea.vmem %s2, %s204
      %s206 = smul.u32 16, %s19
      %v207 = vld [vmem:[%s185] sm:$0xff]
      %v208 = vld [vmem:[%s185 + $0x8] sm:$0xff]
      %v209 = vld [vmem:[%s185 + $0x10] sm:$0xff]
      %v210 = vld [vmem:[%s185 + $0x18] sm:$0xff]
      %v211 = vld [vmem:[%s185 + $0x20] sm:$0xff]
      %v212 = vld [vmem:[%s185 + $0x28] sm:$0xff]
      %v213 = vld [vmem:[%s185 + $0x30] sm:$0xff]
      %v214 = vld [vmem:[%s185 + $0x38] sm:$0xff]
      %v215 = vld [vmem:[%s185 + $0x40] sm:$0xff]
      %v216 = vld [vmem:[%s185 + $0x48] sm:$0xff]
      %v217 = vld [vmem:[%s185 + $0x50] sm:$0xff]
      %v218 = vld [vmem:[%s185 + $0x58] sm:$0xff]
      %v219 = vld [vmem:[%s185 + $0x60] sm:$0xff]
      %v220 = vld [vmem:[%s185 + $0x68] sm:$0xff]
      %v221 = vld [vmem:[%s185 + $0x70] sm:$0xff]
      %v222 = vld [vmem:[%s185 + $0x78] sm:$0xff]
      %vm223 = vcmask 31744
      %224 = vst.msk [vmem:[%s195] sm:$0xff] %vm223, %v207
      %225 = vst.msk [vmem:[%s195 + $0x8] sm:$0xff] %vm223, %v208
      %226 = vst.msk [vmem:[%s195 + $0x10] sm:$0xff] %vm223, %v209
      %227 = vst.msk [vmem:[%s195 + $0x18] sm:$0xff] %vm223, %v210
      %228 = vst.msk [vmem:[%s195 + $0x20] sm:$0xff] %vm223, %v211
      %229 = vst.msk [vmem:[%s195 + $0x28] sm:$0xff] %vm223, %v212
      %230 = vst.msk [vmem:[%s195 + $0x30] sm:$0xff] %vm223, %v213
      %231 = vst.msk [vmem:[%s195 + $0x38] sm:$0xff] %vm223, %v214
      %232 = vst.msk [vmem:[%s195 + $0x40] sm:$0xff] %vm223, %v215
      %233 = vst.msk [vmem:[%s195 + $0x48] sm:$0xff] %vm223, %v216
      %234 = vst.msk [vmem:[%s195 + $0x50] sm:$0xff] %vm223, %v217
      %235 = vst.msk [vmem:[%s195 + $0x58] sm:$0xff] %vm223, %v218
      %236 = vst.msk [vmem:[%s195 + $0x60] sm:$0xff] %vm223, %v219
      %237 = vst.msk [vmem:[%s195 + $0x68] sm:$0xff] %vm223, %v220
      %238 = vst.msk [vmem:[%s195 + $0x70] sm:$0xff] %vm223, %v221
      %239 = vst.msk [vmem:[%s195 + $0x78] sm:$0xff] %vm223, %v222
      %v240 = vld [vmem:[%s185] sm:$0xff]
      %v241 = vld [vmem:[%s185 + $0x8] sm:$0xff]
      %v242 = vld [vmem:[%s185 + $0x10] sm:$0xff]
      %v243 = vld [vmem:[%s185 + $0x18] sm:$0xff]
      %v244 = vld [vmem:[%s185 + $0x20] sm:$0xff]
      %v245 = vld [vmem:[%s185 + $0x28] sm:$0xff]
      %v246 = vld [vmem:[%s185 + $0x30] sm:$0xff]
      %v247 = vld [vmem:[%s185 + $0x38] sm:$0xff]
      %v248 = vld [vmem:[%s185 + $0x40] sm:$0xff]
      %v249 = vld [vmem:[%s185 + $0x48] sm:$0xff]
      %v250 = vld [vmem:[%s185 + $0x50] sm:$0xff]
      %v251 = vld [vmem:[%s185 + $0x58] sm:$0xff]
      %v252 = vld [vmem:[%s185 + $0x60] sm:$0xff]
      %v253 = vld [vmem:[%s185 + $0x68] sm:$0xff]
      %v254 = vld [vmem:[%s185 + $0x70] sm:$0xff]
      %v255 = vld [vmem:[%s185 + $0x78] sm:$0xff]
      %257 = vset.pattern.permute.xlu0 4
      %258 = vperm.xlu0 %257, %v240
      %v259 = vpop.permute.xlu0 %258
      %262 = vset.pattern.permute.xlu0 4
      %263 = vperm.xlu0 %262, %v241
      %v264 = vpop.permute.xlu0 %263
      %267 = vset.pattern.permute.xlu0 4
      %268 = vperm.xlu0 %267, %v242
      %v269 = vpop.permute.xlu0 %268
      %272 = vset.pattern.permute.xlu0 4
      %273 = vperm.xlu0 %272, %v243
      %v274 = vpop.permute.xlu0 %273
      %277 = vset.pattern.permute.xlu0 4
      %278 = vperm.xlu0 %277, %v244
      %v279 = vpop.permute.xlu0 %278
      %282 = vset.pattern.permute.xlu0 4
      %283 = vperm.xlu0 %282, %v245
      %v284 = vpop.permute.xlu0 %283
      %287 = vset.pattern.permute.xlu0 4
      %288 = vperm.xlu0 %287, %v246
      %v289 = vpop.permute.xlu0 %288
      %292 = vset.pattern.permute.xlu0 4
      %293 = vperm.xlu0 %292, %v247
      %v294 = vpop.permute.xlu0 %293
      %297 = vset.pattern.permute.xlu0 4
      %298 = vperm.xlu0 %297, %v248
      %v299 = vpop.permute.xlu0 %298
      %302 = vset.pattern.permute.xlu0 4
      %303 = vperm.xlu0 %302, %v249
      %v304 = vpop.permute.xlu0 %303
      %307 = vset.pattern.permute.xlu0 4
      %308 = vperm.xlu0 %307, %v250
      %v309 = vpop.permute.xlu0 %308
      %312 = vset.pattern.permute.xlu0 4
      %313 = vperm.xlu0 %312, %v251
      %v314 = vpop.permute.xlu0 %313
      %317 = vset.pattern.permute.xlu0 4
      %318 = vperm.xlu0 %317, %v252
      %v319 = vpop.permute.xlu0 %318
      %322 = vset.pattern.permute.xlu0 4
      %323 = vperm.xlu0 %322, %v253
      %v324 = vpop.permute.xlu0 %323
      %327 = vset.pattern.permute.xlu0 4
      %328 = vperm.xlu0 %327, %v254
      %v329 = vpop.permute.xlu0 %328
      %332 = vset.pattern.permute.xlu0 4
      %333 = vperm.xlu0 %332, %v255
      %v334 = vpop.permute.xlu0 %333
      %v336 = vmul.f32 %v240, %v259
      %v337 = vmul.f32 %v241, %v264
      %v338 = vmul.f32 %v242, %v269
      %v339 = vmul.f32 %v243, %v274
      %v340 = vmul.f32 %v244, %v279
      %v341 = vmul.f32 %v245, %v284
      %v342 = vmul.f32 %v246, %v289
      %v343 = vmul.f32 %v247, %v294
      %v344 = vmul.f32 %v248, %v299
      %v345 = vmul.f32 %v249, %v304
      %v346 = vmul.f32 %v250, %v309
      %v347 = vmul.f32 %v251, %v314
      %v348 = vmul.f32 %v252, %v319
      %v349 = vmul.f32 %v253, %v324
      %v350 = vmul.f32 %v254, %v329
      %v351 = vmul.f32 %v255, %v334
      %368 = vrot.lane.b32.xlu0 %v336, 123
      %v369 = vpop.permute.xlu0 %368
      %370 = vrot.lane.b32.xlu0 %v337, 123
      %v371 = vpop.permute.xlu0 %370
      %372 = vrot.lane.b32.xlu0 %v338, 123
      %v373 = vpop.permute.xlu0 %372
      %374 = vrot.lane.b32.xlu0 %v339, 123
      %v375 = vpop.permute.xlu0 %374
      %376 = vrot.lane.b32.xlu0 %v340, 123
      %v377 = vpop.permute.xlu0 %376
      %378 = vrot.lane.b32.xlu0 %v341, 123
      %v379 = vpop.permute.xlu0 %378
      %380 = vrot.lane.b32.xlu0 %v342, 123
      %v381 = vpop.permute.xlu0 %380
      %382 = vrot.lane.b32.xlu0 %v343, 123
      %v383 = vpop.permute.xlu0 %382
      %384 = vrot.lane.b32.xlu0 %v344, 123
      %v385 = vpop.permute.xlu0 %384
      %386 = vrot.lane.b32.xlu0 %v345, 123
      %v387 = vpop.permute.xlu0 %386
      %388 = vrot.lane.b32.xlu0 %v346, 123
      %v389 = vpop.permute.xlu0 %388
      %390 = vrot.lane.b32.xlu0 %v347, 123
      %v391 = vpop.permute.xlu0 %390
      %392 = vrot.lane.b32.xlu0 %v348, 123
      %v393 = vpop.permute.xlu0 %392
      %394 = vrot.lane.b32.xlu0 %v349, 123
      %v395 = vpop.permute.xlu0 %394
      %396 = vrot.lane.b32.xlu0 %v350, 123
      %v397 = vpop.permute.xlu0 %396
      %398 = vrot.lane.b32.xlu0 %v351, 123
      %v399 = vpop.permute.xlu0 %398
      %vm416 = vcmask 23552
      %417 = vst.msk [vmem:[%s205] sm:$0xff] %vm416, %v369
      %418 = vst.msk [vmem:[%s205 + $0x8] sm:$0xff] %vm416, %v371
      %419 = vst.msk [vmem:[%s205 + $0x10] sm:$0xff] %vm416, %v373
      %420 = vst.msk [vmem:[%s205 + $0x18] sm:$0xff] %vm416, %v375
      %421 = vst.msk [vmem:[%s205 + $0x20] sm:$0xff] %vm416, %v377
      %422 = vst.msk [vmem:[%s205 + $0x28] sm:$0xff] %vm416, %v379
      %423 = vst.msk [vmem:[%s205 + $0x30] sm:$0xff] %vm416, %v381
      %424 = vst.msk [vmem:[%s205 + $0x38] sm:$0xff] %vm416, %v383
      %425 = vst.msk [vmem:[%s205 + $0x40] sm:$0xff] %vm416, %v385
      %426 = vst.msk [vmem:[%s205 + $0x48] sm:$0xff] %vm416, %v387
      %427 = vst.msk [vmem:[%s205 + $0x50] sm:$0xff] %vm416, %v389
      %428 = vst.msk [vmem:[%s205 + $0x58] sm:$0xff] %vm416, %v391
      %429 = vst.msk [vmem:[%s205 + $0x60] sm:$0xff] %vm416, %v393
      %430 = vst.msk [vmem:[%s205 + $0x68] sm:$0xff] %vm416, %v395
      %431 = vst.msk [vmem:[%s205 + $0x70] sm:$0xff] %vm416, %v397
      %432 = vst.msk [vmem:[%s205 + $0x78] sm:$0xff] %vm416, %v399
      %s433 = smul.u32 16, %s19
      %p434 = scmp.lt.s32.totalorder %s18, 1
      %s435 = scalar_select %p434, %s18, 1
      %p436 = scmp.lt.s32.totalorder %s433, 15
      %s437 = scalar_select %p436, %s433, 15
      %s438 = smul.addr %s435, 16
      %s439 = sadd.s32 %s437, %s438
      %s440 = smul.addr %s439, 8
      %s441 = scalar_lea.vmem %s1, %s440
      %s442 = smul.u32 16, %s19
      %p443 = scmp.lt.s32.totalorder %s18, 1
      %s444 = scalar_select %p443, %s18, 1
      %p445 = scmp.lt.s32.totalorder %s442, 15
      %s446 = scalar_select %p445, %s442, 15
      %s447 = smul.addr %s444, 16
      %s448 = sadd.s32 %s446, %s447
      %s449 = smul.addr %s448, 8
      %s450 = scalar_lea.vmem %s2, %s449
      // Predicated region
      $region25: #{tpu_custom_call.1} parent=23 // pred_check
        %p451 = pneg %p74
      $region26: #{tpu_custom_call.1} parent=23 // pred_check_branch
        %453 = sbr.rel (%p451) target = $region28
      $region27: #{tpu_custom_call.1} parent=23 // pred_region
        %s454 = smul.u32 16, %s19
      $region28: #{tpu_custom_call.1} parent=23 // pred_fallthru
        _
      // Predicated region
      $region29: #{tpu_custom_call.1} parent=23 // pred_check
        %p455 = pneg %p102
      $region30: #{tpu_custom_call.1} parent=23 // pred_check_branch
        %457 = sbr.rel (%p455) target = $region32
      $region31: #{tpu_custom_call.1} parent=23 // pred_region
        %s458 = smul.u32 16, %s19
      $region32: #{tpu_custom_call.1} parent=23 // pred_fallthru
        _
    $region24: #{tpu_custom_call.1} parent=5 // pred_fallthru
      _
    %p459 = scmp.le.s32.totalorder 2, %s9
    // Predicated region
    $region33: #{tpu_custom_call.1} parent=5 // pred_check
      %p460 = pneg %p459
    $region34: #{tpu_custom_call.1} parent=5 // pred_check_branch
      %462 = sbr.rel (%p460) target = $region36
    $region35: #{tpu_custom_call.1} parent=5 // pred_region
      %s463 = ssub.s32 %s9, 2
      // Predicated region
      $region37: #{tpu_custom_call.1} parent=35 // pred_check
        %p464 = pneg %p80
      $region38: #{tpu_custom_call.1} parent=35 // pred_check_branch
        %466 = sbr.rel (%p464) target = $region40
      $region39: #{tpu_custom_call.1} parent=35 // pred_region
        %s467 = smul.u32 16, %s21
        %p468 = scmp.lt.s32.totalorder %s20, 1
        %s469 = scalar_select %p468, %s20, 1
        %p470 = scmp.lt.s32.totalorder %s467, 15
        %s471 = scalar_select %p470, %s467, 15
        %s472 = smul.addr %s469, 16
        %s473 = sadd.s32 %s471, %s472
        %s474 = smul.addr %s473, 8
        %s475 = scalar_lea.vmem %s1, %s474
      $region40: #{tpu_custom_call.1} parent=35 // pred_fallthru
        _
      // Predicated region
      $region41: #{tpu_custom_call.1} parent=35 // pred_check
        %p476 = pneg %p108
      $region42: #{tpu_custom_call.1} parent=35 // pred_check_branch
        %478 = sbr.rel (%p476) target = $region44
      $region43: #{tpu_custom_call.1} parent=35 // pred_region
        %s479 = smul.u32 16, %s21
        %p480 = scmp.lt.s32.totalorder %s20, 1
        %s481 = scalar_select %p480, %s20, 1
        %p482 = scmp.lt.s32.totalorder %s479, 15
        %s483 = scalar_select %p482, %s479, 15
        %s484 = smul.addr %s481, 16
        %s485 = sadd.s32 %s483, %s484
        %s486 = smul.addr %s485, 8
        %s487 = scalar_lea.vmem %s2, %s486
      $region44: #{tpu_custom_call.1} parent=35 // pred_fallthru
        _
    $region36: #{tpu_custom_call.1} parent=5 // pred_fallthru
      _
  $region6: #{tpu_custom_call.1} parent=0 // loop_footer
    %s13 = sadd.s32 1, %s9
  $region7: #{tpu_custom_call.1} parent=0 // loop_footer_branch
    %8 = sbr.rel target = $region3
  $region8: #{tpu_custom_call.1} parent=0 // loop_exit
    _

</llo_original>
